<compile_context>
chip_gen: v5e
topology: v5e:2x2
jax: 0.10.0
libtpu: 0.0.40
codegen_flags: <defaults>
</compile_context>

<pallas_src>
import jax
import jax.numpy as jnp
from jax.experimental import pallas as pl
from jax.experimental.pallas import tpu as pltpu


def _round_up(x, m):
    return ((x + m - 1) // m) * m


def _cplx_conv1d_kernel(wr_ref, wps_ref, wms_ref, xr_ref, xi_ref, yr_ref, yi_ref):
    """One row-tile of the complex cross-correlation.

    wr_ref  : (K,) f32 SMEM   -> Re(w)
    wps_ref : (K,) f32 SMEM   -> Re(w) + Im(w)
    wms_ref : (K,) f32 SMEM   -> Im(w) - Re(w)
    xr_ref, xi_ref : (TILE_R, W) f32 VMEM, zero padded layout
        [K-1 zeros | x (L) | zeros up to W],  W multiple of 128, W >= L + K - 1
    yr_ref, yi_ref : (TILE_R, W) f32 VMEM; valid output is lanes [0, L_out).
    """
    k_taps = wr_ref.shape[0]
    w = xr_ref.shape[-1]

    # One load per plane; accumulators stay live across the (small, fully
    # unrolled) tap loop and are written back exactly once at the end.
    xr = xr_ref[...]
    xi = xi_ref[...]

    yr = jnp.zeros(yr_ref.shape, jnp.float32)
    yi = jnp.zeros(yi_ref.shape, jnp.float32)

    for k in range(k_taps):  # K is small & static -> fully unrolled
        if k == 0:
            xr_k, xi_k = xr, xi
        else:
            # roll by (w - k) == shift left by k: rolled[:, n] = x[:, n + k].
            # Wraparound lanes source from the left zero-padding region
            # (n + k - w <= K - 2 < K - 1 for all valid output lanes n),
            # so the valid lanes [0, L_out) stay exact.
            xr_k = pltpu.roll(xr, w - k, 1)
            xi_k = pltpu.roll(xi, w - k, 1)
        wr = wr_ref[k]
        wps = wps_ref[k]
        wms = wms_ref[k]
        # Gauss 3-multiply complex MAC:
        #   yr += wr*xr_k - wi*xi_k ;  yi += wr*xi_k + wi*xr_k
        t = (xr_k + xi_k) * wr
        yr = yr + (t - xi_k * wps)
        yi = yi + (t + xr_k * wms)

    yr_ref[...] = yr
    yi_ref[...] = yi


def parametric_conv_forward(x, h_coeffs):
    """x: (N, C=1, L) complex64, h_coeffs: (K,) complex -> (N, C, L+K-1) complex64."""
    n, c, l = x.shape
    assert c == 1, "conv1d with weight (1,1,K) requires in_channels == 1"
    k = h_coeffs.shape[0]
    padding = k - 1
    l_out = l + k - 1
    nr = n * c

    # Lane-dense working width: a multiple of 128 covering L_out lanes.
    # (W >= L + K - 1 also guarantees the data + left zero pad fit, and the
    # roll wraparound lands in the left zeros -- see kernel comment.)
    w_lanes = _round_up(l_out, 128)

    # Row tile: multiple of 8, capped by (a) an ~8 MiB budget for the 8
    # pipelined planes (2 in + 2 out, double buffered) so we stay well under
    # the default scoped-VMEM limit on every generation incl. v7x, and
    # (b) the number of rows actually present (don't pad tiny batches up).
    bytes_per_row = 4 * 2 * w_lanes * 4          # planes * buffers * lanes * f32
    tile_r = (8 * 1024 * 1024) // bytes_per_row
    tile_r = max(8, min(512, (tile_r // 8) * 8))
    tile_r = min(tile_r, _round_up(max(nr, 1), 8))
    nr_pad = _round_up(max(nr, 1), tile_r)

    x2 = x.reshape(nr, l)
    # Real/imag split + zero pad (left K-1 zeros, lane pad to W, row pad to
    # the tile): elementwise + pad ops fuse into a single XLA pass producing
    # the padded f32 planes.
    x_r = jnp.pad(jnp.real(x2).astype(jnp.float32),
                  ((0, nr_pad - nr), (padding, w_lanes - padding - l)))
    x_i = jnp.pad(jnp.imag(x2).astype(jnp.float32),
                  ((0, nr_pad - nr), (padding, w_lanes - padding - l)))

    w_r = jnp.real(h_coeffs).astype(jnp.float32)
    w_i = jnp.imag(h_coeffs).astype(jnp.float32)
    w_ps = w_r + w_i                 # Re + Im
    w_ms = w_i - w_r                 # Im - Re

    grid = (nr_pad // tile_r,)
    block = pl.BlockSpec((tile_r, w_lanes), lambda i: (i, 0))

    cost = pl.CostEstimate(
        flops=8 * k * nr * l_out,
        transcendentals=0,
        bytes_accessed=4 * nr_pad * w_lanes * 4,
    )

    y_r, y_i = pl.pallas_call(
        _cplx_conv1d_kernel,
        grid=grid,
        out_shape=(
            jax.ShapeDtypeStruct((nr_pad, w_lanes), jnp.float32),
            jax.ShapeDtypeStruct((nr_pad, w_lanes), jnp.float32),
        ),
        in_specs=[
            pl.BlockSpec(memory_space=pltpu.SMEM),   # Re(w)
            pl.BlockSpec(memory_space=pltpu.SMEM),   # Re(w) + Im(w)
            pl.BlockSpec(memory_space=pltpu.SMEM),   # Im(w) - Re(w)
            block,                                   # x_r padded
            block,                                   # x_i padded
        ],
        out_specs=(block, block),
        compiler_params=pltpu.CompilerParams(
            dimension_semantics=("parallel",),
            vmem_limit_bytes=32 * 1024 * 1024,
        ),
        cost_estimate=cost,
    )(w_r, w_ps, w_ms, x_r, x_i)

    # Crop valid rows/lanes and recombine; crop + lax.complex + reshape fuse
    # into a single pass over the output planes.
    out = jax.lax.complex(y_r[:nr, :l_out], y_i[:nr, :l_out])
    return out.reshape(n, c, l_out).astype(jnp.complex64)


def _reference(x, h_coeffs):
    """Pure-JAX reference: full complex cross-correlation per row."""
    n, c, l = x.shape
    k = h_coeffs.shape[0]
    xc = x.astype(jnp.complex64).reshape(n * c, l)
    w = h_coeffs.astype(jnp.complex64)
    # cross-correlation == convolution with reversed (not conjugated) kernel
    rows = [jnp.convolve(xc[r], w[::-1], mode="full") for r in range(n * c)]
    return jnp.stack(rows).reshape(n, c, l + k - 1).astype(jnp.complex64)


if __name__ == "__main__":
    key = jax.random.PRNGKey(0)
    k_x_r, k_x_i, k_w_r, k_w_i = jax.random.split(key, 4)

    # small shapes consistent with the module's forward: (batch, channels=1, seq)
    N, C, L = 2, 1, 16
    K = 5  # number of optimized-filter taps (stand-in for the CSV length)

    x = (jax.random.normal(k_x_r, (N, C, L), jnp.float32)
         + 1j * jax.random.normal(k_x_i, (N, C, L), jnp.float32)).astype(jnp.complex64)

    # TODO(synk): the real module loads complex taps from a CSV checkpoint;
    # here they are initialized deterministically instead.
    h_coeffs = (jax.random.normal(k_w_r, (K,), jnp.float32)
                + 1j * jax.random.normal(k_w_i, (K,), jnp.float32)).astype(jnp.complex64)

    out = jax.jit(parametric_conv_forward)(x, h_coeffs)
    out = jax.block_until_ready(out)

    ref = _reference(x, h_coeffs)
    assert out.shape == (N, C, L + K - 1)
    assert out.dtype == jnp.complex64
    assert jnp.allclose(out, ref, atol=1e-4, rtol=1e-4)

    print("KERNEL_OK")
</pallas_src>

<mosaic_0001>
module attributes {stable_mosaic.version = 11 : i64} {
  func.func @_cplx_conv1d_kernel(%arg0: i32, %arg1: memref<5xf32, #tpu.memory_space<smem>>, %arg2: memref<5xf32, #tpu.memory_space<smem>>, %arg3: memref<5xf32, #tpu.memory_space<smem>>, %arg4: memref<8x128xf32, #tpu.memory_space<vmem>>, %arg5: memref<8x128xf32, #tpu.memory_space<vmem>>, %arg6: memref<8x128xf32, #tpu.memory_space<vmem>>, %arg7: memref<8x128xf32, #tpu.memory_space<vmem>>) attributes {dimension_semantics = [#tpu.dimension_semantics<parallel>], iteration_bounds = array<i64: 1>, scalar_prefetch = 0 : i64, scratch_operands = 0 : i64, tpu.core_type = #tpu.core_type<tc>, window_params = [{transform_indices = @transform_0, window_bounds = array<i64: 5>}, {transform_indices = @transform_1, window_bounds = array<i64: 5>}, {transform_indices = @transform_2, window_bounds = array<i64: 5>}, {transform_indices = @transform_3, window_bounds = array<i64: 8, 128>}, {transform_indices = @transform_4, window_bounds = array<i64: 8, 128>}, {transform_indices = @transform_5, window_bounds = array<i64: 8, 128>}, {transform_indices = @transform_6, window_bounds = array<i64: 8, 128>}]} {
    %c0 = arith.constant 0 : index
    %c0_0 = arith.constant 0 : index
    %0 = vector.load %arg4[%c0, %c0_0] : memref<8x128xf32, #tpu.memory_space<vmem>>, vector<8x128xf32>
    %c0_1 = arith.constant 0 : index
    %c0_2 = arith.constant 0 : index
    %1 = vector.load %arg5[%c0_1, %c0_2] : memref<8x128xf32, #tpu.memory_space<vmem>>, vector<8x128xf32>
    %cst = arith.constant 0.000000e+00 : f32
    %2 = vector.broadcast %cst : f32 to vector<8x128xf32>
    %cst_3 = arith.constant 0.000000e+00 : f32
    %3 = vector.broadcast %cst_3 : f32 to vector<8x128xf32>
    %c0_4 = arith.constant 0 : index
    %4 = memref.load %arg1[%c0_4] : memref<5xf32, #tpu.memory_space<smem>>
    %c0_5 = arith.constant 0 : index
    %5 = memref.load %arg2[%c0_5] : memref<5xf32, #tpu.memory_space<smem>>
    %c0_6 = arith.constant 0 : index
    %6 = memref.load %arg3[%c0_6] : memref<5xf32, #tpu.memory_space<smem>>
    %7 = arith.addf %0, %1 : vector<8x128xf32>
    %8 = vector.broadcast %4 : f32 to vector<8x128xf32>
    %9 = arith.mulf %7, %8 : vector<8x128xf32>
    %10 = vector.broadcast %5 : f32 to vector<8x128xf32>
    %11 = arith.mulf %1, %10 : vector<8x128xf32>
    %12 = arith.subf %9, %11 : vector<8x128xf32>
    %13 = arith.addf %2, %12 : vector<8x128xf32>
    %14 = vector.broadcast %6 : f32 to vector<8x128xf32>
    %15 = arith.mulf %0, %14 : vector<8x128xf32>
    %16 = arith.addf %9, %15 : vector<8x128xf32>
    %17 = arith.addf %3, %16 : vector<8x128xf32>
    %c127_i32 = arith.constant 127 : i32
    %18 = tpu.dynamic_rotate %0 by %c127_i32 dim 1 : vector<8x128xf32>, i32 -> vector<8x128xf32>
    %c127_i32_7 = arith.constant 127 : i32
    %19 = tpu.dynamic_rotate %1 by %c127_i32_7 dim 1 : vector<8x128xf32>, i32 -> vector<8x128xf32>
    %c1 = arith.constant 1 : index
    %20 = memref.load %arg1[%c1] : memref<5xf32, #tpu.memory_space<smem>>
    %c1_8 = arith.constant 1 : index
    %21 = memref.load %arg2[%c1_8] : memref<5xf32, #tpu.memory_space<smem>>
    %c1_9 = arith.constant 1 : index
    %22 = memref.load %arg3[%c1_9] : memref<5xf32, #tpu.memory_space<smem>>
    %23 = arith.addf %18, %19 : vector<8x128xf32>
    %24 = vector.broadcast %20 : f32 to vector<8x128xf32>
    %25 = arith.mulf %23, %24 : vector<8x128xf32>
    %26 = vector.broadcast %21 : f32 to vector<8x128xf32>
    %27 = arith.mulf %19, %26 : vector<8x128xf32>
    %28 = arith.subf %25, %27 : vector<8x128xf32>
    %29 = arith.addf %13, %28 : vector<8x128xf32>
    %30 = vector.broadcast %22 : f32 to vector<8x128xf32>
    %31 = arith.mulf %18, %30 : vector<8x128xf32>
    %32 = arith.addf %25, %31 : vector<8x128xf32>
    %33 = arith.addf %17, %32 : vector<8x128xf32>
    %c126_i32 = arith.constant 126 : i32
    %34 = tpu.dynamic_rotate %0 by %c126_i32 dim 1 : vector<8x128xf32>, i32 -> vector<8x128xf32>
    %c126_i32_10 = arith.constant 126 : i32
    %35 = tpu.dynamic_rotate %1 by %c126_i32_10 dim 1 : vector<8x128xf32>, i32 -> vector<8x128xf32>
    %c2 = arith.constant 2 : index
    %36 = memref.load %arg1[%c2] : memref<5xf32, #tpu.memory_space<smem>>
    %c2_11 = arith.constant 2 : index
    %37 = memref.load %arg2[%c2_11] : memref<5xf32, #tpu.memory_space<smem>>
    %c2_12 = arith.constant 2 : index
    %38 = memref.load %arg3[%c2_12] : memref<5xf32, #tpu.memory_space<smem>>
    %39 = arith.addf %34, %35 : vector<8x128xf32>
    %40 = vector.broadcast %36 : f32 to vector<8x128xf32>
    %41 = arith.mulf %39, %40 : vector<8x128xf32>
    %42 = vector.broadcast %37 : f32 to vector<8x128xf32>
    %43 = arith.mulf %35, %42 : vector<8x128xf32>
    %44 = arith.subf %41, %43 : vector<8x128xf32>
    %45 = arith.addf %29, %44 : vector<8x128xf32>
    %46 = vector.broadcast %38 : f32 to vector<8x128xf32>
    %47 = arith.mulf %34, %46 : vector<8x128xf32>
    %48 = arith.addf %41, %47 : vector<8x128xf32>
    %49 = arith.addf %33, %48 : vector<8x128xf32>
    %c125_i32 = arith.constant 125 : i32
    %50 = tpu.dynamic_rotate %0 by %c125_i32 dim 1 : vector<8x128xf32>, i32 -> vector<8x128xf32>
    %c125_i32_13 = arith.constant 125 : i32
    %51 = tpu.dynamic_rotate %1 by %c125_i32_13 dim 1 : vector<8x128xf32>, i32 -> vector<8x128xf32>
    %c3 = arith.constant 3 : index
    %52 = memref.load %arg1[%c3] : memref<5xf32, #tpu.memory_space<smem>>
    %c3_14 = arith.constant 3 : index
    %53 = memref.load %arg2[%c3_14] : memref<5xf32, #tpu.memory_space<smem>>
    %c3_15 = arith.constant 3 : index
    %54 = memref.load %arg3[%c3_15] : memref<5xf32, #tpu.memory_space<smem>>
    %55 = arith.addf %50, %51 : vector<8x128xf32>
    %56 = vector.broadcast %52 : f32 to vector<8x128xf32>
    %57 = arith.mulf %55, %56 : vector<8x128xf32>
    %58 = vector.broadcast %53 : f32 to vector<8x128xf32>
    %59 = arith.mulf %51, %58 : vector<8x128xf32>
    %60 = arith.subf %57, %59 : vector<8x128xf32>
    %61 = arith.addf %45, %60 : vector<8x128xf32>
    %62 = vector.broadcast %54 : f32 to vector<8x128xf32>
    %63 = arith.mulf %50, %62 : vector<8x128xf32>
    %64 = arith.addf %57, %63 : vector<8x128xf32>
    %65 = arith.addf %49, %64 : vector<8x128xf32>
    %c124_i32 = arith.constant 124 : i32
    %66 = tpu.dynamic_rotate %0 by %c124_i32 dim 1 : vector<8x128xf32>, i32 -> vector<8x128xf32>
    %c124_i32_16 = arith.constant 124 : i32
    %67 = tpu.dynamic_rotate %1 by %c124_i32_16 dim 1 : vector<8x128xf32>, i32 -> vector<8x128xf32>
    %c4 = arith.constant 4 : index
    %68 = memref.load %arg1[%c4] : memref<5xf32, #tpu.memory_space<smem>>
    %c4_17 = arith.constant 4 : index
    %69 = memref.load %arg2[%c4_17] : memref<5xf32, #tpu.memory_space<smem>>
    %c4_18 = arith.constant 4 : index
    %70 = memref.load %arg3[%c4_18] : memref<5xf32, #tpu.memory_space<smem>>
    %71 = arith.addf %66, %67 : vector<8x128xf32>
    %72 = vector.broadcast %68 : f32 to vector<8x128xf32>
    %73 = arith.mulf %71, %72 : vector<8x128xf32>
    %74 = vector.broadcast %69 : f32 to vector<8x128xf32>
    %75 = arith.mulf %67, %74 : vector<8x128xf32>
    %76 = arith.subf %73, %75 : vector<8x128xf32>
    %77 = arith.addf %61, %76 : vector<8x128xf32>
    %78 = vector.broadcast %70 : f32 to vector<8x128xf32>
    %79 = arith.mulf %66, %78 : vector<8x128xf32>
    %80 = arith.addf %73, %79 : vector<8x128xf32>
    %81 = arith.addf %65, %80 : vector<8x128xf32>
    %c0_19 = arith.constant 0 : index
    %c0_20 = arith.constant 0 : index
    %82 = vector.load %arg6[%c0_19, %c0_20] : memref<8x128xf32, #tpu.memory_space<vmem>>, vector<8x128xf32>
    tpu.vector_store %arg6[%c0_19, %c0_20], %77 {strides = array<i32>} : memref<8x128xf32, #tpu.memory_space<vmem>>, vector<8x128xf32>,
    %c0_21 = arith.constant 0 : index
    %c0_22 = arith.constant 0 : index
    %83 = vector.load %arg7[%c0_21, %c0_22] : memref<8x128xf32, #tpu.memory_space<vmem>>, vector<8x128xf32>
    tpu.vector_store %arg7[%c0_21, %c0_22], %81 {strides = array<i32>} : memref<8x128xf32, #tpu.memory_space<vmem>>, vector<8x128xf32>,
    return
  }
  func.func @transform_0(%arg0: i32) -> i32 {
    %c0_i32 = arith.constant 0 : i32
    %c0_i32_0 = arith.constant 0 : i32
    return %c0_i32 : i32
  }
  func.func @transform_1(%arg0: i32) -> i32 {
    %c0_i32 = arith.constant 0 : i32
    %c0_i32_0 = arith.constant 0 : i32
    return %c0_i32 : i32
  }
  func.func @transform_2(%arg0: i32) -> i32 {
    %c0_i32 = arith.constant 0 : i32
    %c0_i32_0 = arith.constant 0 : i32
    return %c0_i32 : i32
  }
  func.func @transform_3(%arg0: i32) -> (i32, i32) {
    %c0_i32 = arith.constant 0 : i32
    %c0_i32_0 = arith.constant 0 : i32
    return %arg0, %c0_i32 : i32, i32
  }
  func.func @transform_4(%arg0: i32) -> (i32, i32) {
    %c0_i32 = arith.constant 0 : i32
    %c0_i32_0 = arith.constant 0 : i32
    return %arg0, %c0_i32 : i32, i32
  }
  func.func @transform_5(%arg0: i32) -> (i32, i32) {
    %c0_i32 = arith.constant 0 : i32
    %c0_i32_0 = arith.constant 0 : i32
    return %arg0, %c0_i32 : i32, i32
  }
  func.func @transform_6(%arg0: i32) -> (i32, i32) {
    %c0_i32 = arith.constant 0 : i32
    %c0_i32_0 = arith.constant 0 : i32
    return %arg0, %c0_i32 : i32, i32
  }
}

</mosaic_0001>

<llo_original>
// kernel: custom-call
$region0: #{custom-call}
  %s0 = inlined_call_operand.hbm [shape: c64[5], index: 0, kind: input, shape index: {}]
  %s1 = inlined_call_operand.vmem [shape: f32[5], index: 1, kind: output, shape index: {}]
  $region1: #{custom-call} parent=0
    #allocation0 [shape = 's32[1]{0}', space=sflag, size = 0x4, scoped, tag = 'scoped memory for custom-call']
    %2 = vsyncpa [#allocation0], 0
    %s4 = sshll.u32 %s0, 4
    %s5 = int_to_ptr.hbm [resolvable:$true] %s4
    %s6 = sshll.u32 %s1, 4
    %s7 = int_to_ptr.vmem [resolvable:$true] %s6
    %9 = dma.hbm_to_vmem [thread:$0]  %s5, 16, %s7, [#allocation0]
    %11 = dma.done [#allocation0], 16
    %12 = vsyncpa [#allocation0], 1

// kernel: custom-call.3
$region0: #{custom-call.3}
  %s0 = inlined_call_operand.hbm [shape: c64[2,1,16], index: 0, kind: input, shape index: {}]
  %s1 = inlined_call_operand.vmem [shape: f32[2,1,16], index: 1, kind: output, shape index: {}]
  %s2 = scalar_lea.hbm %s0, 2
  $region1: #{custom-call.3} parent=0
    #allocation0 [shape = 's32[1]{0}', space=sflag, size = 0x4, scoped, tag = 'scoped memory for custom-call.3']
    %3 = vsyncpa [#allocation0], 0
    %s5 = sshll.u32 %s2, 4
    %s6 = int_to_ptr.hbm [resolvable:$true] %s5
    %s7 = sshll.u32 %s1, 4
    %s8 = int_to_ptr.vmem [resolvable:$true] %s7
    %10 = dma.hbm_to_vmem [thread:$0]  %s6, 32, %s8, [#allocation0]
    %12 = dma.done [#allocation0], 32
    %13 = vsyncpa [#allocation0], 1

// kernel: custom-call.1
$region0: #{custom-call.1}
  %s0 = inlined_call_operand.hbm [shape: c64[5], index: 0, kind: input, shape index: {}]
  %s1 = inlined_call_operand.vmem [shape: f32[5], index: 1, kind: output, shape index: {}]
  %s2 = scalar_lea.hbm %s0, 1
  $region1: #{custom-call.1} parent=0
    #allocation0 [shape = 's32[1]{0}', space=sflag, size = 0x4, scoped, tag = 'scoped memory for custom-call.1']
    %3 = vsyncpa [#allocation0], 0
    %s5 = sshll.u32 %s2, 4
    %s6 = int_to_ptr.hbm [resolvable:$true] %s5
    %s7 = sshll.u32 %s1, 4
    %s8 = int_to_ptr.vmem [resolvable:$true] %s7
    %10 = dma.hbm_to_vmem [thread:$0]  %s6, 16, %s8, [#allocation0]
    %12 = dma.done [#allocation0], 16
    %13 = vsyncpa [#allocation0], 1

// kernel: custom-call.2
$region0: #{custom-call.2}
  %s0 = inlined_call_operand.hbm [shape: c64[2,1,16], index: 0, kind: input, shape index: {}]
  %s1 = inlined_call_operand.vmem [shape: f32[2,1,16], index: 1, kind: output, shape index: {}]
  $region1: #{custom-call.2} parent=0
    #allocation0 [shape = 's32[1]{0}', space=sflag, size = 0x4, scoped, tag = 'scoped memory for custom-call.2']
    %2 = vsyncpa [#allocation0], 0
    %s4 = sshll.u32 %s0, 4
    %s5 = int_to_ptr.hbm [resolvable:$true] %s4
    %s6 = sshll.u32 %s1, 4
    %s7 = int_to_ptr.vmem [resolvable:$true] %s6
    %9 = dma.hbm_to_vmem [thread:$0]  %s5, 32, %s7, [#allocation0]
    %11 = dma.done [#allocation0], 32
    %12 = vsyncpa [#allocation0], 1

// kernel: custom-call.4
$region0: #{custom-call.4}
  %s0 = inlined_call_operand.vmem [shape: f32[2,1,20], index: 0, kind: input, shape index: {}]
  %s1 = inlined_call_operand.vmem [shape: f32[2,1,20], index: 1, kind: input, shape index: {}]
  %s2 = inlined_call_operand.hbm [shape: c64[2,1,20], index: 2, kind: output, shape index: {}]
  %s3 = scalar_lea.hbm %s2, 2
  $region1: #{custom-call.4} parent=0
    #allocation0 [shape = 's32[1]{0}', space=sflag, size = 0x4, scoped, tag = 'scoped memory for custom-call.4']
    %4 = vsyncpa [#allocation0], 0
    %s6 = sshll.u32 %s0, 4
    %s7 = int_to_ptr.vmem [resolvable:$true] %s6
    %s8 = sshll.u32 %s2, 4
    %s9 = int_to_ptr.hbm [resolvable:$true] %s8
    %11 = dma.vmem_to_hbm [thread:$0]  %s7, 32, %s9, [#allocation0]
    %13 = dma.done [#allocation0], 32
    %14 = vsyncpa [#allocation0], 1
  $region2: #{custom-call.4} parent=0
    #allocation1 [shape = 's32[1]{0}', space=sflag, size = 0x4, scoped, tag = 'scoped memory for custom-call.4']
    %15 = vsyncpa [#allocation1], 0
    %s17 = sshll.u32 %s1, 4
    %s18 = int_to_ptr.vmem [resolvable:$true] %s17
    %s19 = sshll.u32 %s3, 4
    %s20 = int_to_ptr.hbm [resolvable:$true] %s19
    %22 = dma.vmem_to_hbm [thread:$0]  %s18, 32, %s20, [#allocation1]
    %24 = dma.done [#allocation1], 32
    %25 = vsyncpa [#allocation1], 1

// kernel: parametric_conv_forward.1
$region0: #{parametric_conv_forward.1}
  #allocation0 [shape = 'u32[]', space=smem, size = 0x4, offset = 0x4, fixed_abs, tag = 'smem constant byte address 0x4 - core index']
  #allocation1 [shape = 'u32[72,128]{1,0:T(1,128)}', space=vmem, size = 0x9000, scoped, tag = 'internal scratch']
  %s0 = inlined_call_operand.vmem [shape: f32[5], index: 0, kind: input, shape index: {}]
  %s1 = inlined_call_operand.vmem [shape: f32[5], index: 1, kind: input, shape index: {}]
  %s2 = inlined_call_operand.vmem [shape: f32[5], index: 2, kind: input, shape index: {}]
  %s3 = inlined_call_operand.vmem [shape: f32[8,128], index: 3, kind: input, shape index: {}]
  %s4 = inlined_call_operand.vmem [shape: f32[8,128], index: 4, kind: input, shape index: {}]
  %s5 = inlined_call_operand.vmem [shape: f32[8,128], index: 5, kind: output, shape index: {0}]
  %s6 = inlined_call_operand.vmem [shape: f32[8,128], index: 6, kind: output, shape index: {1}]
  %7 = xla_tuple %s5, %s6
  %s8 = sld [smem:[#allocation0]]
  $region50: #{parametric_conv_forward.1} parent=0
    _
  %s10 = ssub.s32 1, %s8
  %s11 = scalar_select 0, %s10, %s8
  $region1: #{parametric_conv_forward.1} parent=0
    #allocation2 [shape = 'u8[512]{0}', space=smem, size = 0x200, scoped, tag = 'input window, operand 0, single buffered']
    #allocation3 [shape = 's32[1]{0}', space=sflag, size = 0x4, scoped, tag = 'scoped memory for parametric_conv_forward.1']
    #allocation4 [shape = 'u8[512]{0}', space=smem, size = 0x200, scoped, tag = 'input window, operand 1, single buffered']
    #allocation5 [shape = 's32[1]{0}', space=sflag, size = 0x4, scoped, tag = 'scoped memory for parametric_conv_forward.1']
    #allocation6 [shape = 'u8[512]{0}', space=smem, size = 0x200, scoped, tag = 'input window, operand 2, single buffered']
    %12 = vsyncpa [#allocation3], 0
    %13 = vsyncpa [#allocation5], 0
    // Predicated region
    $region2: #{parametric_conv_forward.1} parent=1 // pred_check
      _
    $region3: #{parametric_conv_forward.1} parent=1 // pred_check_branch
      %15 = sbr.rel (0) target = $region5
    $region4: #{parametric_conv_forward.1} parent=1 // pred_region
      %17 = vsyncadd [#allocation3], 0
      %s19 = sshll.u32 %s0, 4
      %s20 = int_to_ptr.vmem [resolvable:$true] %s19
      %22 = dma.vmem_to_smem %s20, 16, [#allocation2], [#allocation3]
    $region5: #{parametric_conv_forward.1} parent=1 // pred_fallthru
      _
    // Predicated region
    $region6: #{parametric_conv_forward.1} parent=1 // pred_check
      _
    $region7: #{parametric_conv_forward.1} parent=1 // pred_check_branch
      %24 = sbr.rel (0) target = $region9
    $region8: #{parametric_conv_forward.1} parent=1 // pred_region
      %26 = vsyncadd [#allocation5], 0
      %s28 = sshll.u32 %s1, 4
      %s29 = int_to_ptr.vmem [resolvable:$true] %s28
      %31 = dma.vmem_to_smem %s29, 16, [#allocation4], [#allocation5]
    $region9: #{parametric_conv_forward.1} parent=1 // pred_fallthru
      _
    // Predicated region
    $region10: #{parametric_conv_forward.1} parent=1 // pred_check
      _
    $region11: #{parametric_conv_forward.1} parent=1 // pred_check_branch
      %33 = sbr.rel (0) target = $region13
    $region12: #{parametric_conv_forward.1} parent=1 // pred_region
      %35 = vsyncadd [#allocation5], 0
      %s37 = sshll.u32 %s2, 4
      %s38 = int_to_ptr.vmem [resolvable:$true] %s37
      %40 = dma.vmem_to_smem %s38, 16, [#allocation6], [#allocation5]
    $region13: #{parametric_conv_forward.1} parent=1 // pred_fallthru
      _
    // Predicated region
    $region14: #{parametric_conv_forward.1} parent=1 // pred_check
      _
    $region15: #{parametric_conv_forward.1} parent=1 // pred_check_branch
      %42 = sbr.rel (0) target = $region17
    $region16: #{parametric_conv_forward.1} parent=1 // pred_region
      _
    $region17: #{parametric_conv_forward.1} parent=1 // pred_fallthru
      _
    // Predicated region
    $region18: #{parametric_conv_forward.1} parent=1 // pred_check
      _
    $region19: #{parametric_conv_forward.1} parent=1 // pred_check_branch
      %44 = sbr.rel (0) target = $region21
    $region20: #{parametric_conv_forward.1} parent=1 // pred_region
      _
    $region21: #{parametric_conv_forward.1} parent=1 // pred_fallthru
      _
    // Predicated region
    $region22: #{parametric_conv_forward.1} parent=1 // pred_check
      _
    $region23: #{parametric_conv_forward.1} parent=1 // pred_check_branch
      %46 = sbr.rel (0) target = $region25
    $region24: #{parametric_conv_forward.1} parent=1 // pred_region
      %48 = dma.done [#allocation3], 16
    $region25: #{parametric_conv_forward.1} parent=1 // pred_fallthru
      _
    // Predicated region
    $region26: #{parametric_conv_forward.1} parent=1 // pred_check
      _
    $region27: #{parametric_conv_forward.1} parent=1 // pred_check_branch
      %50 = sbr.rel (0) target = $region29
    $region28: #{parametric_conv_forward.1} parent=1 // pred_region
      %52 = dma.done [#allocation5], 16
    $region29: #{parametric_conv_forward.1} parent=1 // pred_fallthru
      _
    // Predicated region
    $region30: #{parametric_conv_forward.1} parent=1 // pred_check
      _
    $region31: #{parametric_conv_forward.1} parent=1 // pred_check_branch
      %54 = sbr.rel (0) target = $region33
    $region32: #{parametric_conv_forward.1} parent=1 // pred_region
      %56 = dma.done [#allocation5], 16
    $region33: #{parametric_conv_forward.1} parent=1 // pred_fallthru
      _
    %57 = sfence
    %v58 = vld [vmem:[%s3] sm:$0xff]
    %v59 = vld [vmem:[%s4] sm:$0xff]
    %s60 = sld [smem:[#allocation2]]
    %s61 = sld [smem:[#allocation4]]
    %s62 = sld [smem:[#allocation6]]
    %v63 = vadd.f32 %v58, %v59
    %v64 = vstv %s60
    %v65 = vmul.f32 %v63, %v64
    %v66 = vstv %s61
    %v67 = vmul.f32 %v59, %v66
    %v68 = vsub.f32 %v65, %v67
    %v69 = vadd.f32 %v68, 0.0
    %v70 = vstv %s62
    %v71 = vmul.f32 %v58, %v70
    %v72 = vadd.f32 %v65, %v71
    %v73 = vadd.f32 %v72, 0.0
    %74 = vrot.lane.b32.xlu0 %v58, 127
    %v75 = vpop.permute.xlu0 %74
    %76 = vrot.lane.b32.xlu0 %v59, 127
    %v77 = vpop.permute.xlu0 %76
    %s78 = sld [smem:[#allocation2 + $0x1]]
    %s79 = sld [smem:[#allocation4 + $0x1]]
    %s80 = sld [smem:[#allocation6 + $0x1]]
    %v81 = vadd.f32 %v75, %v77
    %v82 = vstv %s78
    %v83 = vmul.f32 %v81, %v82
    %v84 = vstv %s79
    %v85 = vmul.f32 %v77, %v84
    %v86 = vsub.f32 %v83, %v85
    %v87 = vadd.f32 %v69, %v86
    %v88 = vstv %s80
    %v89 = vmul.f32 %v75, %v88
    %v90 = vadd.f32 %v83, %v89
    %v91 = vadd.f32 %v73, %v90
    %92 = vrot.lane.b32.xlu0 %v58, 126
    %v93 = vpop.permute.xlu0 %92
    %94 = vrot.lane.b32.xlu0 %v59, 126
    %v95 = vpop.permute.xlu0 %94
    %s96 = sld [smem:[#allocation2 + $0x2]]
    %s97 = sld [smem:[#allocation4 + $0x2]]
    %s98 = sld [smem:[#allocation6 + $0x2]]
    %v99 = vadd.f32 %v93, %v95
    %v100 = vstv %s96
    %v101 = vmul.f32 %v99, %v100
    %v102 = vstv %s97
    %v103 = vmul.f32 %v95, %v102
    %v104 = vsub.f32 %v101, %v103
    %v105 = vadd.f32 %v87, %v104
    %v106 = vstv %s98
    %v107 = vmul.f32 %v93, %v106
    %v108 = vadd.f32 %v101, %v107
    %v109 = vadd.f32 %v91, %v108
    %110 = vrot.lane.b32.xlu0 %v58, 125
    %v111 = vpop.permute.xlu0 %110
    %112 = vrot.lane.b32.xlu0 %v59, 125
    %v113 = vpop.permute.xlu0 %112
    %s114 = sld [smem:[#allocation2 + $0x3]]
    %s115 = sld [smem:[#allocation4 + $0x3]]
    %s116 = sld [smem:[#allocation6 + $0x3]]
    %v117 = vadd.f32 %v111, %v113
    %v118 = vstv %s114
    %v119 = vmul.f32 %v117, %v118
    %v120 = vstv %s115
    %v121 = vmul.f32 %v113, %v120
    %v122 = vsub.f32 %v119, %v121
    %v123 = vadd.f32 %v105, %v122
    %v124 = vstv %s116
    %v125 = vmul.f32 %v111, %v124
    %v126 = vadd.f32 %v119, %v125
    %v127 = vadd.f32 %v109, %v126
    %128 = vrot.lane.b32.xlu0 %v58, 124
    %v129 = vpop.permute.xlu0 %128
    %130 = vrot.lane.b32.xlu0 %v59, 124
    %v131 = vpop.permute.xlu0 %130
    %s132 = sld [smem:[#allocation2 + $0x4]]
    %s133 = sld [smem:[#allocation4 + $0x4]]
    %s134 = sld [smem:[#allocation6 + $0x4]]
    %v135 = vadd.f32 %v129, %v131
    %v136 = vstv %s132
    %v137 = vmul.f32 %v135, %v136
    %v138 = vstv %s133
    %v139 = vmul.f32 %v131, %v138
    %v140 = vsub.f32 %v137, %v139
    %v141 = vadd.f32 %v123, %v140
    %v142 = vstv %s134
    %v143 = vmul.f32 %v129, %v142
    %v144 = vadd.f32 %v137, %v143
    %v145 = vadd.f32 %v127, %v144
    %146 = vst [vmem:[%s5] sm:$0xff] %v141
    %147 = vst [vmem:[%s6] sm:$0xff] %v145
    // Predicated region
    $region34: #{parametric_conv_forward.1} parent=1 // pred_check
      _
    $region35: #{parametric_conv_forward.1} parent=1 // pred_check_branch
      %149 = sbr.rel (0) target = $region37
    $region36: #{parametric_conv_forward.1} parent=1 // pred_region
      _
    $region37: #{parametric_conv_forward.1} parent=1 // pred_fallthru
      _
    // Predicated region
    $region38: #{parametric_conv_forward.1} parent=1 // pred_check
      _
    $region39: #{parametric_conv_forward.1} parent=1 // pred_check_branch
      %151 = sbr.rel (0) target = $region41
    $region40: #{parametric_conv_forward.1} parent=1 // pred_region
      _
    $region41: #{parametric_conv_forward.1} parent=1 // pred_fallthru
      _
    // Predicated region
    $region42: #{parametric_conv_forward.1} parent=1 // pred_check
      _
    $region43: #{parametric_conv_forward.1} parent=1 // pred_check_branch
      %153 = sbr.rel (0) target = $region45
    $region44: #{parametric_conv_forward.1} parent=1 // pred_region
      _
    $region45: #{parametric_conv_forward.1} parent=1 // pred_fallthru
      _
    // Predicated region
    $region46: #{parametric_conv_forward.1} parent=1 // pred_check
      _
    $region47: #{parametric_conv_forward.1} parent=1 // pred_check_branch
      %155 = sbr.rel (0) target = $region49
    $region48: #{parametric_conv_forward.1} parent=1 // pred_region
      _
    $region49: #{parametric_conv_forward.1} parent=1 // pred_fallthru
      _
    %156 = vsyncpa [#allocation3], 1
    %157 = vsyncpa [#allocation5], 1

</llo_original>
